<compile_context>
chip_gen: v5e
topology: v5e:2x2
jax: 0.10.0
libtpu: 0.0.40
codegen_flags: <defaults>
</compile_context>

<pallas_src>
import jax
import jax.numpy as jnp
from jax import lax
from jax.experimental import pallas as pl
from jax.experimental.pallas import tpu as pltpu

# Deterministic stand-in for configer.get('network', 'loss_weights')[...]
LOSS_WEIGHTS = {
    "coord_loss": 2.0,
    "obj_loss": 1.0,
    "noobj_loss": 0.5,
    "cls_loss": 1.0,
}


def _round_up(x, m):
    return ((x + m - 1) // m) * m


def _make_kernel(d, tile_n, n_total, weights):
    coord_w = float(weights["coord_loss"])
    obj_w = float(weights["obj_loss"])
    noobj_w = float(weights["noobj_loss"])
    cls_w = float(weights["cls_loss"])

    def kernel(pred_ref, targ_ref, obj_ref, noobj_ref, out_ref):
        i = pl.program_id(0)

        @pl.when(i == 0)
        def _init():
            out_ref[...] = jnp.zeros_like(out_ref)

        p = pred_ref[...].astype(jnp.float32)        # [D, T]
        t = targ_ref[...].astype(jnp.float32)        # [D, T]
        obj = obj_ref[...].astype(jnp.float32)       # [1, T]
        noobj = noobj_ref[...].astype(jnp.float32)   # [1, T]

        # Per-feature (row) index, broadcast over the lane (N) axis.
        row = lax.broadcasted_iota(jnp.int32, (d, 1), 0)     # [D, 1]
        is_conf = row == 4
        is_mse = jnp.logical_or(row == 2, row == 3)

        # Effective target: the conf row trains against objmask, everything
        # else against the matching targets row.
        teff = jnp.where(is_conf, obj, t)                    # [D, T]

        # One full-width BCE per element (clamped logs, PyTorch nn.BCELoss).
        # Shared between the obj- and noobj-weighted conf terms.
        log_p = jnp.maximum(jnp.log(p), -100.0)
        log_1mp = jnp.maximum(jnp.log(1.0 - p), -100.0)
        bce = -(teff * log_p + (1.0 - teff) * log_1mp)

        diff = p - teff
        elem = jnp.where(is_mse, diff * diff, bce)           # [D, T]

        # Per-row mask weights:
        #   rows 0-3 -> coord_w * obj   (x, y BCE; w, h MSE)
        #   row  4   -> obj_w * obj + noobj_w * noobj  (shared conf BCE)
        #   rows >=5 -> cls_w * obj
        w_obj = jnp.where(row <= 3, coord_w,
                          jnp.where(is_conf, obj_w, cls_w))  # [D, 1]
        w_noobj = jnp.where(is_conf, noobj_w, 0.0)           # [D, 1]
        weight = w_obj * obj + w_noobj * noobj               # [D, T]

        # Mask out the padded tail of the last (partial) tile.
        col = i * tile_n + lax.broadcasted_iota(jnp.int32, (1, tile_n), 1)
        contrib = jnp.where(col < n_total, weight * elem, 0.0)

        out_ref[...] += jnp.sum(contrib)

    return kernel


def yolov3_loss(prediction, targets, objmask, noobjmask, *, tile_n=8192,
                loss_weights=LOSS_WEIGHTS):
    """prediction/targets: [B, A, G, G, 5+C]; objmask/noobjmask: [B, A, G, G]."""
    batch = targets.shape[0]
    d = prediction.shape[-1]
    n = 1
    for s in prediction.shape[:-1]:
        n *= s

    # Lane-dense layout: features on sublanes, the long N axis on lanes.
    # (wrapper-side transpose/reshape is layout plumbing; masks reshape for free)
    pred_t = prediction.reshape(n, d).T          # [D, N]
    targ_t = targets.reshape(n, d).T             # [D, N]
    obj_r = objmask.reshape(1, n)                # [1, N]
    noobj_r = noobjmask.reshape(1, n)            # [1, N]

    # Tile size: multiple of 128 lanes, capped by (rounded-up) N.
    tile = min(int(tile_n), _round_up(n, 128))
    tile = max(128, (tile // 128) * 128)
    grid = pl.cdiv(n, tile)

    kernel = _make_kernel(d, tile, n, loss_weights)

    itemsize = max(jnp.dtype(prediction.dtype).itemsize,
                   jnp.dtype(targets.dtype).itemsize)
    mask_itemsize = jnp.dtype(objmask.dtype).itemsize
    block_bytes = tile * (2 * d * itemsize + 2 * mask_itemsize)
    # Room for double-buffered inputs + slack; stays under v7x's 64 MiB VMEM.
    vmem_limit = int(min(max(6 * block_bytes, 4 << 20), 48 << 20))

    cost = pl.CostEstimate(
        flops=10 * n * d,
        transcendentals=2 * n * d,
        bytes_accessed=2 * n * d * itemsize + 2 * n * mask_itemsize + 4,
    )

    out = pl.pallas_call(
        kernel,
        out_shape=jax.ShapeDtypeStruct((1, 1), jnp.float32),
        grid=(grid,),
        in_specs=[
            pl.BlockSpec((d, tile), lambda i: (0, i)),
            pl.BlockSpec((d, tile), lambda i: (0, i)),
            pl.BlockSpec((1, tile), lambda i: (0, i)),
            pl.BlockSpec((1, tile), lambda i: (0, i)),
        ],
        out_specs=pl.BlockSpec((1, 1), lambda i: (0, 0)),
        compiler_params=pltpu.CompilerParams(
            dimension_semantics=("arbitrary",),
            vmem_limit_bytes=vmem_limit,
        ),
        cost_estimate=cost,
    )(pred_t, targ_t, obj_r, noobj_r)
    # Note: on v7x a leading 'parallel' grid axis of size 2 (one per TensorCore)
    # with a [2, 1] partial-sum output could further split the reduction.
    return out[0, 0] / batch


def _bce_elem(p, t):
    # PyTorch nn.BCELoss element: -(t*log(p) + (1-t)*log(1-p)), log clamped at -100.
    log_p = jnp.maximum(jnp.log(p), -100.0)
    log_1mp = jnp.maximum(jnp.log(1.0 - p), -100.0)
    return -(t * log_p + (1.0 - t) * log_1mp)


def _reference_loss(prediction, targets, objmask, noobjmask):
    # Pure-JAX reference with the same mask-weighted formulation.
    obj = objmask.astype(jnp.float32)
    noobj = noobjmask.astype(jnp.float32)
    p = prediction.astype(jnp.float32)
    t = targets.astype(jnp.float32)
    lx = jnp.sum(obj * _bce_elem(p[..., 0], t[..., 0]))
    ly = jnp.sum(obj * _bce_elem(p[..., 1], t[..., 1]))
    lw = jnp.sum(obj * (p[..., 2] - t[..., 2]) ** 2)
    lh = jnp.sum(obj * (p[..., 3] - t[..., 3]) ** 2)
    lobj = jnp.sum(obj * _bce_elem(p[..., 4], obj))
    lnoobj = jnp.sum(noobj * _bce_elem(p[..., 4], obj))
    lcls = jnp.sum(obj[..., None] * _bce_elem(p[..., 5:], t[..., 5:]))
    total = ((lx + ly + lw + lh) * LOSS_WEIGHTS["coord_loss"]
             + lobj * LOSS_WEIGHTS["obj_loss"]
             + lnoobj * LOSS_WEIGHTS["noobj_loss"]
             + lcls * LOSS_WEIGHTS["cls_loss"])
    return total / targets.shape[0]


if __name__ == "__main__":
    B, A, G, C = 2, 3, 8, 4          # batch, anchors, grid, num_classes
    D = 5 + C
    key = jax.random.PRNGKey(0)
    k1, k2, k3 = jax.random.split(key, 3)

    # Probabilities in (0,1) so BCE terms are well-defined (matches sigmoid outputs).
    prediction = jax.nn.sigmoid(jax.random.normal(k1, (B, A, G, G, D), jnp.float32))
    targets = jax.nn.sigmoid(jax.random.normal(k2, (B, A, G, G, D), jnp.float32))

    objmask = (jax.random.uniform(k3, (B, A, G, G)) > 0.9).astype(jnp.float32)
    noobjmask = 1.0 - objmask

    # tile_n=128 exercises multi-step grid accumulation (N = 384 -> 3 tiles).
    loss = yolov3_loss(prediction, targets, objmask, noobjmask, tile_n=128)
    loss = jax.block_until_ready(loss)

    ref = _reference_loss(prediction, targets, objmask, noobjmask)
    assert jnp.allclose(loss, ref, rtol=1e-5, atol=1e-5), (loss, ref)
    print("KERNEL_OK")
</pallas_src>

<mosaic_0001>
module attributes {stable_mosaic.version = 11 : i64} {
  func.func @kernel(%arg0: i32, %arg1: memref<9x128xf32, #tpu.memory_space<vmem>>, %arg2: memref<9x128xf32, #tpu.memory_space<vmem>>, %arg3: memref<1x128xf32, #tpu.memory_space<vmem>>, %arg4: memref<1x128xf32, #tpu.memory_space<vmem>>, %arg5: memref<1x1xf32, #tpu.memory_space<vmem>>) attributes {dimension_semantics = [#tpu.dimension_semantics<arbitrary>], iteration_bounds = array<i64: 3>, scalar_prefetch = 0 : i64, scratch_operands = 0 : i64, tpu.core_type = #tpu.core_type<tc>, window_params = [{transform_indices = @transform_0, window_bounds = array<i64: 9, 128>}, {transform_indices = @transform_1, window_bounds = array<i64: 9, 128>}, {transform_indices = @transform_2, window_bounds = array<i64: 1, 128>}, {transform_indices = @transform_3, window_bounds = array<i64: 1, 128>}, {pipeline_mode = #tpu.pipeline_mode<synchronous>, transform_indices = @transform_4, window_bounds = array<i64: 1, 1>}]} {
    %c0_i32 = arith.constant 0 : i32
    %0 = arith.cmpi eq, %arg0, %c0_i32 : i32
    %1 = arith.extui %0 : i1 to i32
    %c0_i32_0 = arith.constant 0 : i32
    %2 = arith.cmpi ne, %1, %c0_i32_0 : i32
    scf.if %2 {
      %cst_24 = arith.constant 0.000000e+00 : f32
      %76 = vector.broadcast %cst_24 : f32 to vector<1x1xf32>
      %c0_25 = arith.constant 0 : index
      %c0_26 = arith.constant 0 : index
      %77 = vector.load %arg5[%c0_25, %c0_26] : memref<1x1xf32, #tpu.memory_space<vmem>>, vector<1x1xf32>
      tpu.vector_store %arg5[%c0_25, %c0_26], %76 {strides = array<i32>} : memref<1x1xf32, #tpu.memory_space<vmem>>, vector<1x1xf32>,
    } else {
    }
    %c0 = arith.constant 0 : index
    %c0_1 = arith.constant 0 : index
    %3 = vector.load %arg1[%c0, %c0_1] : memref<9x128xf32, #tpu.memory_space<vmem>>, vector<9x128xf32>
    %c0_2 = arith.constant 0 : index
    %c0_3 = arith.constant 0 : index
    %4 = vector.load %arg2[%c0_2, %c0_3] : memref<9x128xf32, #tpu.memory_space<vmem>>, vector<9x128xf32>
    %c0_4 = arith.constant 0 : index
    %c0_5 = arith.constant 0 : index
    %5 = vector.load %arg3[%c0_4, %c0_5] : memref<1x128xf32, #tpu.memory_space<vmem>>, vector<1x128xf32>
    %c0_6 = arith.constant 0 : index
    %c0_7 = arith.constant 0 : index
    %6 = vector.load %arg4[%c0_6, %c0_7] : memref<1x128xf32, #tpu.memory_space<vmem>>, vector<1x128xf32>
    %7 = tpu.iota {dimensions = array<i32: 0>} : vector<9x1xi32>
    %c4_i32 = arith.constant 4 : i32
    %8 = vector.broadcast %c4_i32 : i32 to vector<9x1xi32>
    %9 = arith.cmpi eq, %7, %8 : vector<9x1xi32>
    %c2_i32 = arith.constant 2 : i32
    %10 = vector.broadcast %c2_i32 : i32 to vector<9x1xi32>
    %11 = arith.cmpi eq, %7, %10 : vector<9x1xi32>
    %c3_i32 = arith.constant 3 : i32
    %12 = vector.broadcast %c3_i32 : i32 to vector<9x1xi32>
    %13 = arith.cmpi eq, %7, %12 : vector<9x1xi32>
    %14 = arith.ori %11, %13 : vector<9x1xi1>
    %15 = vector.shape_cast %9 : vector<9x1xi1> to vector<9x1xi1>
    %16 = vector.broadcast %15 : vector<9x1xi1> to vector<9x128xi1>
    %17 = vector.shape_cast %5 : vector<1x128xf32> to vector<1x128xf32>
    %18 = vector.broadcast %17 : vector<1x128xf32> to vector<9x128xf32>
    %19 = arith.select %16, %18, %4 : vector<9x128xi1>, vector<9x128xf32>
    %20 = math.log %3 : vector<9x128xf32>
    %cst = arith.constant -1.000000e+02 : f32
    %21 = vector.broadcast %cst : f32 to vector<9x128xf32>
    %22 = arith.maximumf %20, %21 : vector<9x128xf32>
    %cst_8 = arith.constant 1.000000e+00 : f32
    %23 = vector.broadcast %cst_8 : f32 to vector<9x128xf32>
    %24 = arith.subf %23, %3 : vector<9x128xf32>
    %25 = math.log %24 : vector<9x128xf32>
    %cst_9 = arith.constant -1.000000e+02 : f32
    %26 = vector.broadcast %cst_9 : f32 to vector<9x128xf32>
    %27 = arith.maximumf %25, %26 : vector<9x128xf32>
    %28 = arith.mulf %19, %22 : vector<9x128xf32>
    %cst_10 = arith.constant 1.000000e+00 : f32
    %29 = vector.broadcast %cst_10 : f32 to vector<9x128xf32>
    %30 = arith.subf %29, %19 : vector<9x128xf32>
    %31 = arith.mulf %30, %27 : vector<9x128xf32>
    %32 = arith.addf %28, %31 : vector<9x128xf32>
    %cst_11 = arith.constant 0.000000e+00 : f32
    %33 = vector.broadcast %cst_11 : f32 to vector<9x128xf32>
    %34 = arith.subf %33, %32 : vector<9x128xf32>
    %35 = arith.subf %3, %19 : vector<9x128xf32>
    %36 = arith.mulf %35, %35 : vector<9x128xf32>
    %37 = vector.shape_cast %14 : vector<9x1xi1> to vector<9x1xi1>
    %38 = vector.broadcast %37 : vector<9x1xi1> to vector<9x128xi1>
    %39 = arith.select %38, %36, %34 : vector<9x128xi1>, vector<9x128xf32>
    %c3_i32_12 = arith.constant 3 : i32
    %40 = vector.broadcast %c3_i32_12 : i32 to vector<9x1xi32>
    %41 = arith.cmpi sle, %7, %40 : vector<9x1xi32>
    %cst_13 = arith.constant 1.000000e+00 : f32
    %cst_14 = arith.constant 1.000000e+00 : f32
    %42 = vector.broadcast %cst_13 : f32 to vector<9x1xf32>
    %43 = vector.broadcast %cst_14 : f32 to vector<9x1xf32>
    %44 = arith.select %9, %42, %43 : vector<9x1xi1>, vector<9x1xf32>
    %cst_15 = arith.constant 2.000000e+00 : f32
    %45 = vector.broadcast %cst_15 : f32 to vector<9x1xf32>
    %46 = arith.select %41, %45, %44 : vector<9x1xi1>, vector<9x1xf32>
    %cst_16 = arith.constant 5.000000e-01 : f32
    %cst_17 = arith.constant 0.000000e+00 : f32
    %47 = vector.broadcast %cst_16 : f32 to vector<9x1xf32>
    %48 = vector.broadcast %cst_17 : f32 to vector<9x1xf32>
    %49 = arith.select %9, %47, %48 : vector<9x1xi1>, vector<9x1xf32>
    %50 = vector.broadcast %46 : vector<9x1xf32> to vector<9x128xf32>
    %51 = vector.broadcast %5 : vector<1x128xf32> to vector<9x128xf32>
    %52 = arith.mulf %50, %51 : vector<9x128xf32>
    %53 = vector.broadcast %49 : vector<9x1xf32> to vector<9x128xf32>
    %54 = vector.broadcast %6 : vector<1x128xf32> to vector<9x128xf32>
    %55 = arith.mulf %53, %54 : vector<9x128xf32>
    %56 = arith.addf %52, %55 : vector<9x128xf32>
    %c128_i32 = arith.constant 128 : i32
    %57 = arith.muli %arg0, %c128_i32 : i32
    %58 = tpu.iota {dimensions = array<i32: 1>} : vector<1x128xi32>
    %59 = vector.broadcast %57 : i32 to vector<1x128xi32>
    %60 = arith.addi %59, %58 : vector<1x128xi32>
    %c384_i32 = arith.constant 384 : i32
    %61 = vector.broadcast %c384_i32 : i32 to vector<1x128xi32>
    %62 = arith.cmpi slt, %60, %61 : vector<1x128xi32>
    %63 = arith.mulf %56, %39 : vector<9x128xf32>
    %cst_18 = arith.constant 0.000000e+00 : f32
    %64 = vector.shape_cast %62 : vector<1x128xi1> to vector<1x128xi1>
    %65 = vector.broadcast %64 : vector<1x128xi1> to vector<9x128xi1>
    %66 = vector.broadcast %cst_18 : f32 to vector<9x128xf32>
    %67 = arith.select %65, %63, %66 : vector<9x128xi1>, vector<9x128xf32>
    %c0_19 = arith.constant 0 : index
    %c0_20 = arith.constant 0 : index
    %68 = vector.load %arg5[%c0_19, %c0_20] : memref<1x1xf32, #tpu.memory_space<vmem>>, vector<1x1xf32>
    %69 = vector.shape_cast %67 : vector<9x128xf32> to vector<1x9x128xf32>
    %cst_21 = arith.constant dense<0.000000e+00> : vector<1xf32>
    %70 = vector.multi_reduction <add>, %69, %cst_21 [1, 2] : vector<1x9x128xf32> to vector<1xf32>
    %71 = vector.shape_cast %70 : vector<1xf32> to vector<1x1x1xf32>
    %72 = vector.extract %71[0, 0, 0] : f32 from vector<1x1x1xf32>
    %73 = vector.broadcast %72 : f32 to vector<1x1xf32>
    %74 = arith.addf %68, %73 : vector<1x1xf32>
    %c0_22 = arith.constant 0 : index
    %c0_23 = arith.constant 0 : index
    %75 = vector.load %arg5[%c0_22, %c0_23] : memref<1x1xf32, #tpu.memory_space<vmem>>, vector<1x1xf32>
    tpu.vector_store %arg5[%c0_22, %c0_23], %74 {strides = array<i32>} : memref<1x1xf32, #tpu.memory_space<vmem>>, vector<1x1xf32>,
    return
  }
  func.func @transform_0(%arg0: i32) -> (i32, i32) {
    %c0_i32 = arith.constant 0 : i32
    %c0_i32_0 = arith.constant 0 : i32
    return %c0_i32, %arg0 : i32, i32
  }
  func.func @transform_1(%arg0: i32) -> (i32, i32) {
    %c0_i32 = arith.constant 0 : i32
    %c0_i32_0 = arith.constant 0 : i32
    return %c0_i32, %arg0 : i32, i32
  }
  func.func @transform_2(%arg0: i32) -> (i32, i32) {
    %c0_i32 = arith.constant 0 : i32
    %c0_i32_0 = arith.constant 0 : i32
    return %c0_i32, %arg0 : i32, i32
  }
  func.func @transform_3(%arg0: i32) -> (i32, i32) {
    %c0_i32 = arith.constant 0 : i32
    %c0_i32_0 = arith.constant 0 : i32
    return %c0_i32, %arg0 : i32, i32
  }
  func.func @transform_4(%arg0: i32) -> (i32, i32) {
    %c0_i32 = arith.constant 0 : i32
    %c0_i32_0 = arith.constant 0 : i32
    %c0_i32_1 = arith.constant 0 : i32
    return %c0_i32, %c0_i32_0 : i32, i32
  }
}

</mosaic_0001>

<llo_original>
// kernel: tpu_custom_call.1
$region0: #{tpu_custom_call.1}
  #allocation0 [shape = 'u32[]', space=smem, size = 0x4, offset = 0x4, fixed_abs, tag = 'smem constant byte address 0x4 - core index']
  #allocation1 [shape = 'u32[72,128]{1,0:T(1,128)}', space=vmem, size = 0x9000, scoped, tag = 'internal scratch']
  %s0 = inlined_call_operand.hbm [shape: f32[9,384], index: 0, kind: input, shape index: {}]
  %s1 = inlined_call_operand.hbm [shape: f32[9,384], index: 1, kind: input, shape index: {}]
  %s2 = inlined_call_operand.hbm [shape: f32[1,384], index: 2, kind: input, shape index: {}]
  %s3 = inlined_call_operand.hbm [shape: f32[1,384], index: 3, kind: input, shape index: {}]
  %s4 = inlined_call_operand.hbm [shape: f32[1,1], index: 4, kind: output, shape index: {}]
  %s5 = sld [smem:[#allocation0]]
  $region69: #{tpu_custom_call.1} parent=0
    _
  %s7 = ssub.s32 1, %s5
  %s8 = scalar_select 0, %s7, %s5
  $region1: #{tpu_custom_call.1} parent=0
    #allocation2 [shape = 'u8[16384]{0}', space=vmem, size = 0x4000, scoped, tag = 'input window, operand 0']
    #allocation3 [shape = 's32[2]{0}', space=sflag, size = 0x8, scoped, tag = 'scoped memory for tpu_custom_call.1']
    #allocation4 [shape = 's32[2]{0}', space=sflag, size = 0x8, scoped, tag = 'scoped memory for tpu_custom_call.1']
    #allocation5 [shape = 'u8[16384]{0}', space=vmem, size = 0x4000, scoped, tag = 'input window, operand 1']
    #allocation6 [shape = 's32[2]{0}', space=sflag, size = 0x8, scoped, tag = 'scoped memory for tpu_custom_call.1']
    #allocation7 [shape = 'u8[1024]{0}', space=vmem, size = 0x400, scoped, tag = 'input window, operand 2']
    #allocation8 [shape = 'u8[1024]{0}', space=vmem, size = 0x400, scoped, tag = 'input window, operand 3']
    #allocation9 [shape = 's32[2]{0}', space=sflag, size = 0x8, scoped, tag = 'scoped memory for tpu_custom_call.1']
    #allocation10 [shape = 'u8[512]{0}', space=vmem, size = 0x400, scoped, tag = 'output window, operand 0, single buffered']
    %9 = vsyncpa [#allocation3], 0
    %s10 = scalar_lea.sflag [#allocation3], 1
    %11 = vsyncpa %s10, 0
    %12 = vsyncpa [#allocation6], 0
    %s13 = scalar_lea.sflag [#allocation6], 1
    %14 = vsyncpa %s13, 0
    %15 = vsyncpa [#allocation9], 0
    %s16 = scalar_lea.sflag [#allocation9], 1
    %17 = vsyncpa %s16, 0
    %18 = vsyncpa [#allocation4], 0
    loop: start=0, step=1, limit=5
    $region2: #{tpu_custom_call.1} parent=1 // loop_pre_header
      _
    $region3: #{tpu_custom_call.1} parent=1 // loop_header
      %s20 = sphi 0, %s24
      %p21 = scmp.ge.s32.totalorder %s20, 5
      %s30 = sphi 0, %s32
      %s33 = sphi 0, %s30
      %s34 = sphi 0, %s33
      %s50 = sphi 0, %s34
      %s56 = sphi 0, %s58
      %s59 = sphi 0, %s56
      %s60 = sphi 0, %s59
      %s76 = sphi 0, %s60
      %s82 = sphi 0, %s84
      %s85 = sphi 0, %s82
      %s86 = sphi 0, %s85
      %s102 = sphi 0, %s86
      %s108 = sphi 0, %s110
      %s111 = sphi 0, %s108
      %s112 = sphi 0, %s111
      %s128 = sphi 0, %s112
      %s132 = sphi 0, %s132
      %s134 = sphi 0, %s132
      %s135 = sphi 0, %s134
      %s149 = sphi 0, %s135
    $region4: #{tpu_custom_call.1} parent=1 // loop_header_branch
      %23 = sbr.rel (%p21) target = $region8
    $region5: #{tpu_custom_call.1} parent=1 // loop_body
      %s25 = ssub.s32 %s20, 1
      %s26 = ssub.s32 %s20, 2
      %s27 = sadd.s32 %s20, 1
      %s28 = ssub.s32 %s20, %s27
      %p29 = scmp.eq.s32.totalorder %s28, 0
      %s31 = sadd.s32 %s30, 1
      %s32 = scalar_select %p29, %s30, %s31
      %p35 = pneg %p29
      %p36 = scmp.eq.s32.totalorder %s20, 2
      %p37 = por %p35, %p36
      %p38 = scmp.ne.s32.totalorder %s30, %s33
      %p39 = scmp.eq.s32.totalorder %s20, 0
      %p40 = por %p38, %p39
      %p41 = scmp.ne.s32.totalorder %s30, %s33
      %p42 = scmp.eq.s32.totalorder %s25, 2
      %p43 = por %p41, %p42
      %p44 = scmp.ne.s32.totalorder %s33, %s34
      %p45 = scmp.eq.s32.totalorder %s25, 0
      %p46 = por %p44, %p45
      %p47 = scmp.ne.s32.totalorder %s33, %s34
      %p48 = scmp.eq.s32.totalorder %s26, 2
      %p49 = por %p47, %p48
      %p51 = scmp.ne.s32.totalorder %s34, %s50
      %p52 = scmp.eq.s32.totalorder %s26, 0
      %p53 = por %p51, %p52
      %s54 = ssub.s32 %s20, %s27
      %p55 = scmp.eq.s32.totalorder %s54, 0
      %s57 = sadd.s32 %s56, 1
      %s58 = scalar_select %p55, %s56, %s57
      %p61 = pneg %p55
      %p62 = scmp.eq.s32.totalorder %s20, 2
      %p63 = por %p61, %p62
      %p64 = scmp.ne.s32.totalorder %s56, %s59
      %p65 = scmp.eq.s32.totalorder %s20, 0
      %p66 = por %p64, %p65
      %p67 = scmp.ne.s32.totalorder %s56, %s59
      %p68 = scmp.eq.s32.totalorder %s25, 2
      %p69 = por %p67, %p68
      %p70 = scmp.ne.s32.totalorder %s59, %s60
      %p71 = scmp.eq.s32.totalorder %s25, 0
      %p72 = por %p70, %p71
      %p73 = scmp.ne.s32.totalorder %s59, %s60
      %p74 = scmp.eq.s32.totalorder %s26, 2
      %p75 = por %p73, %p74
      %p77 = scmp.ne.s32.totalorder %s60, %s76
      %p78 = scmp.eq.s32.totalorder %s26, 0
      %p79 = por %p77, %p78
      %s80 = ssub.s32 %s20, %s27
      %p81 = scmp.eq.s32.totalorder %s80, 0
      %s83 = sadd.s32 %s82, 1
      %s84 = scalar_select %p81, %s82, %s83
      %p87 = pneg %p81
      %p88 = scmp.eq.s32.totalorder %s20, 2
      %p89 = por %p87, %p88
      %p90 = scmp.ne.s32.totalorder %s82, %s85
      %p91 = scmp.eq.s32.totalorder %s20, 0
      %p92 = por %p90, %p91
      %p93 = scmp.ne.s32.totalorder %s82, %s85
      %p94 = scmp.eq.s32.totalorder %s25, 2
      %p95 = por %p93, %p94
      %p96 = scmp.ne.s32.totalorder %s85, %s86
      %p97 = scmp.eq.s32.totalorder %s25, 0
      %p98 = por %p96, %p97
      %p99 = scmp.ne.s32.totalorder %s85, %s86
      %p100 = scmp.eq.s32.totalorder %s26, 2
      %p101 = por %p99, %p100
      %p103 = scmp.ne.s32.totalorder %s86, %s102
      %p104 = scmp.eq.s32.totalorder %s26, 0
      %p105 = por %p103, %p104
      %s106 = ssub.s32 %s20, %s27
      %p107 = scmp.eq.s32.totalorder %s106, 0
      %s109 = sadd.s32 %s108, 1
      %s110 = scalar_select %p107, %s108, %s109
      %p113 = pneg %p107
      %p114 = scmp.eq.s32.totalorder %s20, 2
      %p115 = por %p113, %p114
      %p116 = scmp.ne.s32.totalorder %s108, %s111
      %p117 = scmp.eq.s32.totalorder %s20, 0
      %p118 = por %p116, %p117
      %p119 = scmp.ne.s32.totalorder %s108, %s111
      %p120 = scmp.eq.s32.totalorder %s25, 2
      %p121 = por %p119, %p120
      %p122 = scmp.ne.s32.totalorder %s111, %s112
      %p123 = scmp.eq.s32.totalorder %s25, 0
      %p124 = por %p122, %p123
      %p125 = scmp.ne.s32.totalorder %s111, %s112
      %p126 = scmp.eq.s32.totalorder %s26, 2
      %p127 = por %p125, %p126
      %p129 = scmp.ne.s32.totalorder %s112, %s128
      %p130 = scmp.eq.s32.totalorder %s26, 0
      %p131 = por %p129, %p130
      %s133 = sadd.s32 %s132, 1
      %p136 = scmp.eq.s32.totalorder %s20, 2
      %p137 = scmp.ne.s32.totalorder %s132, %s134
      %p138 = scmp.eq.s32.totalorder %s20, 0
      %p139 = por %p137, %p138
      %p140 = scmp.ne.s32.totalorder %s132, %s134
      %p141 = scmp.eq.s32.totalorder %s25, 2
      %p142 = por %p140, %p141
      %p143 = scmp.ne.s32.totalorder %s134, %s135
      %p144 = scmp.eq.s32.totalorder %s25, 0
      %p145 = por %p143, %p144
      %p146 = scmp.ne.s32.totalorder %s134, %s135
      %p147 = scmp.eq.s32.totalorder %s26, 2
      %p148 = por %p146, %p147
      %p150 = scmp.ne.s32.totalorder %s135, %s149
      %p151 = scmp.eq.s32.totalorder %s26, 0
      %p152 = por %p150, %p151
      %p153 = scmp.le.s32.totalorder 1, %s20
      %p154 = scmp.lt.s32.totalorder %s20, 4
      %p155 = pnand %p153, %p154
      %p156 = pneg %p155
      // Predicated region
      $region9: #{tpu_custom_call.1} parent=5 // pred_check
        _
      $region10: #{tpu_custom_call.1} parent=5 // pred_check_branch
        %158 = sbr.rel (%p155) target = $region12
      $region11: #{tpu_custom_call.1} parent=5 // pred_region
        %s159 = ssub.s32 %s20, 1
      $region12: #{tpu_custom_call.1} parent=5 // pred_fallthru
        _
      %p160 = scmp.lt.s32.totalorder %s20, 3
      // Predicated region
      $region13: #{tpu_custom_call.1} parent=5 // pred_check
        %p161 = pneg %p160
      $region14: #{tpu_custom_call.1} parent=5 // pred_check_branch
        %163 = sbr.rel (%p161) target = $region16
      $region15: #{tpu_custom_call.1} parent=5 // pred_region
        // Predicated region
        $region17: #{tpu_custom_call.1} parent=15 // pred_check
          %p164 = pneg %p40
        $region18: #{tpu_custom_call.1} parent=15 // pred_check_branch
          %166 = sbr.rel (%p164) target = $region20
        $region19: #{tpu_custom_call.1} parent=15 // pred_region
          %s167 = sand.u32 %s30, 1
          %s168 = scalar_lea.sflag [#allocation3], %s167
          %s169 = sand.u32 %s30, 1
          %s170 = smul.addr %s169, 16
          %s171 = scalar_lea.vmem [#allocation2], %s170
          %173 = vsyncadd %s168, 0
          %s174 = smul.addr %s20, 8
          %s175 = scalar_lea.hbm %s0, %s174
          %s176 = sshll.u32 %s175, 4
          %s177 = int_to_ptr.hbm [resolvable:$true] %s176
          %s178 = sshll.u32 %s171, 4
          %s179 = int_to_ptr.vmem [resolvable:$true] %s178
          %184 = dma.hbm_to_vmem [thread:$0]  %s177, 256, %s179, %s168, 384, 128, 8
        $region20: #{tpu_custom_call.1} parent=15 // pred_fallthru
          _
        // Predicated region
        $region21: #{tpu_custom_call.1} parent=15 // pred_check
          %p185 = pneg %p66
        $region22: #{tpu_custom_call.1} parent=15 // pred_check_branch
          %187 = sbr.rel (%p185) target = $region24
        $region23: #{tpu_custom_call.1} parent=15 // pred_region
          %s188 = sand.u32 %s20, 1
          %s189 = scalar_lea.sflag [#allocation6], %s188
          %s190 = sand.u32 %s56, 1
          %s191 = smul.addr %s190, 16
          %s192 = scalar_lea.vmem [#allocation5], %s191
          %194 = vsyncadd %s189, 0
          %s195 = smul.addr %s20, 8
          %s196 = scalar_lea.hbm %s1, %s195
          %s197 = sshll.u32 %s196, 4
          %s198 = int_to_ptr.hbm [resolvable:$true] %s197
          %s199 = sshll.u32 %s192, 4
          %s200 = int_to_ptr.vmem [resolvable:$true] %s199
          %205 = dma.hbm_to_vmem [thread:$0]  %s198, 256, %s200, %s189, 384, 128, 8
        $region24: #{tpu_custom_call.1} parent=15 // pred_fallthru
          _
        // Predicated region
        $region25: #{tpu_custom_call.1} parent=15 // pred_check
          %p206 = pneg %p92
        $region26: #{tpu_custom_call.1} parent=15 // pred_check_branch
          %208 = sbr.rel (%p206) target = $region28
        $region27: #{tpu_custom_call.1} parent=15 // pred_region
          %s209 = sand.u32 %s20, 1
          %s210 = scalar_lea.sflag [#allocation6], %s209
          %s211 = sand.u32 %s82, 1
          %s212 = scalar_lea.vmem [#allocation7], %s211
          %214 = vsyncadd %s210, 0
          %s215 = scalar_lea.hbm %s2, %s20
          %s217 = sshll.u32 %s215, 4
          %s218 = int_to_ptr.hbm [resolvable:$true] %s217
          %s219 = sshll.u32 %s212, 4
          %s220 = int_to_ptr.vmem [resolvable:$true] %s219
          %222 = dma.hbm_to_vmem [thread:$0]  %s218, 16, %s220, %s210
        $region28: #{tpu_custom_call.1} parent=15 // pred_fallthru
          _
        // Predicated region
        $region29: #{tpu_custom_call.1} parent=15 // pred_check
          %p223 = pneg %p118
        $region30: #{tpu_custom_call.1} parent=15 // pred_check_branch
          %225 = sbr.rel (%p223) target = $region32
        $region31: #{tpu_custom_call.1} parent=15 // pred_region
          %s226 = sand.u32 %s108, 1
          %s227 = scalar_lea.sflag [#allocation9], %s226
          %s228 = sand.u32 %s108, 1
          %s229 = scalar_lea.vmem [#allocation8], %s228
          %231 = vsyncadd %s227, 0
          %s232 = scalar_lea.hbm %s3, %s20
          %s234 = sshll.u32 %s232, 4
          %s235 = int_to_ptr.hbm [resolvable:$true] %s234
          %s236 = sshll.u32 %s229, 4
          %s237 = int_to_ptr.vmem [resolvable:$true] %s236
          %239 = dma.hbm_to_vmem [thread:$0]  %s235, 16, %s237, %s227
        $region32: #{tpu_custom_call.1} parent=15 // pred_fallthru
          _
      $region16: #{tpu_custom_call.1} parent=5 // pred_fallthru
        _
      %p240 = scmp.le.s32.totalorder 1, %s20
      %p241 = scmp.lt.s32.totalorder %s20, 4
      %p242 = pnand %p240, %p241
      %p243 = pneg %p242
      // Predicated region
      $region33: #{tpu_custom_call.1} parent=5 // pred_check
        _
      $region34: #{tpu_custom_call.1} parent=5 // pred_check_branch
        %245 = sbr.rel (%p242) target = $region36
      $region35: #{tpu_custom_call.1} parent=5 // pred_region
        %s246 = ssub.s32 %s20, 1
        %s247 = sand.u32 %s33, 1
        %s248 = scalar_lea.sflag [#allocation3], %s247
        %s249 = sand.u32 %s33, 1
        %s250 = smul.addr %s249, 16
        %s251 = scalar_lea.vmem [#allocation2], %s250
        // Predicated region
        $region37: #{tpu_custom_call.1} parent=35 // pred_check
          %p252 = pneg %p46
        $region38: #{tpu_custom_call.1} parent=35 // pred_check_branch
          %254 = sbr.rel (%p252) target = $region40
        $region39: #{tpu_custom_call.1} parent=35 // pred_region
          %256 = dma.done %s248, 256
        $region40: #{tpu_custom_call.1} parent=35 // pred_fallthru
          _
        %s257 = sand.u32 %s25, 1
        %s258 = scalar_lea.sflag [#allocation6], %s257
        %s259 = sand.u32 %s59, 1
        %s260 = smul.addr %s259, 16
        %s261 = scalar_lea.vmem [#allocation5], %s260
        // Predicated region
        $region41: #{tpu_custom_call.1} parent=35 // pred_check
          %p262 = pneg %p72
        $region42: #{tpu_custom_call.1} parent=35 // pred_check_branch
          %264 = sbr.rel (%p262) target = $region44
        $region43: #{tpu_custom_call.1} parent=35 // pred_region
          %266 = dma.done %s258, 256
        $region44: #{tpu_custom_call.1} parent=35 // pred_fallthru
          _
        %s267 = sand.u32 %s25, 1
        %s268 = scalar_lea.sflag [#allocation6], %s267
        %s269 = sand.u32 %s85, 1
        %s270 = scalar_lea.vmem [#allocation7], %s269
        // Predicated region
        $region45: #{tpu_custom_call.1} parent=35 // pred_check
          %p271 = pneg %p98
        $region46: #{tpu_custom_call.1} parent=35 // pred_check_branch
          %273 = sbr.rel (%p271) target = $region48
        $region47: #{tpu_custom_call.1} parent=35 // pred_region
          %275 = dma.done %s268, 16
        $region48: #{tpu_custom_call.1} parent=35 // pred_fallthru
          _
        %s276 = sand.u32 %s111, 1
        %s277 = scalar_lea.sflag [#allocation9], %s276
        %s278 = sand.u32 %s111, 1
        %s279 = scalar_lea.vmem [#allocation8], %s278
        // Predicated region
        $region49: #{tpu_custom_call.1} parent=35 // pred_check
          %p280 = pneg %p124
        $region50: #{tpu_custom_call.1} parent=35 // pred_check_branch
          %282 = sbr.rel (%p280) target = $region52
        $region51: #{tpu_custom_call.1} parent=35 // pred_region
          %284 = dma.done %s277, 16
        $region52: #{tpu_custom_call.1} parent=35 // pred_fallthru
          _
        %s285 = sand.u32 %s33, 1
        %s286 = scalar_lea.sflag [#allocation3], %s285
        %s287 = sand.u32 %s33, 1
        %s288 = smul.addr %s287, 16
        %s289 = scalar_lea.vmem [#allocation2], %s288
        %p290 = pneg %p46
        %p291 = pneg %p43
        %s292 = sand.u32 %s25, 1
        %s293 = scalar_lea.sflag [#allocation6], %s292
        %s294 = sand.u32 %s59, 1
        %s295 = smul.addr %s294, 16
        %s296 = scalar_lea.vmem [#allocation5], %s295
        %p297 = pneg %p72
        %p298 = pneg %p69
        %s299 = sand.u32 %s25, 1
        %s300 = scalar_lea.sflag [#allocation6], %s299
        %s301 = sand.u32 %s85, 1
        %s302 = scalar_lea.vmem [#allocation7], %s301
        %p303 = pneg %p98
        %p304 = pneg %p95
        %s305 = sand.u32 %s111, 1
        %s306 = scalar_lea.sflag [#allocation9], %s305
        %s307 = sand.u32 %s111, 1
        %s308 = scalar_lea.vmem [#allocation8], %s307
        %p309 = pneg %p124
        %p310 = pneg %p121
        %p311 = pneg %p145
        %p312 = pneg %p142
        %p313 = scmp.eq.s32.totalorder %s25, 0
        // Predicated region
        $region53: #{tpu_custom_call.1} parent=35 // pred_check
          %p314 = pneg %p313
        $region54: #{tpu_custom_call.1} parent=35 // pred_check_branch
          %316 = sbr.rel (%p314) target = $region56
        $region55: #{tpu_custom_call.1} parent=35 // pred_region
          %vm317 = vcmask 0
          %318 = vst.msk [vmem:[#allocation10] sm:$0x1] %vm317, 0.0
        $region56: #{tpu_custom_call.1} parent=35 // pred_fallthru
          _
        %v319 = vld [vmem:[%s251] sm:$0xff]
        %v320 = vld [vmem:[%s251 + $0x8] sm:$0x1]
        %v321 = vld [vmem:[%s261] sm:$0xff]
        %v322 = vld [vmem:[%s261 + $0x8] sm:$0x1]
        %v323 = vld [vmem:[%s270] sm:$0x1]
        %v324 = vld [vmem:[%s279] sm:$0x1]
        %v325 = vlaneseq
        %v326 = vshrl.u32 %v325, 7
        %v327 = vadd.s32 %v326, 8
        %vm328 = vcmp.eq.s32.totalorder %v326, 4
        %vm329 = vcmp.eq.s32.totalorder %v327, 4
        %vm330 = vcmp.eq.s32.totalorder %v326, 2
        %vm331 = vcmp.eq.s32.totalorder %v327, 2
        %vm332 = vcmp.eq.s32.totalorder %v326, 3
        %vm333 = vcmp.eq.s32.totalorder %v327, 3
        %vm334 = vmor %vm330, %vm332
        %vm335 = vmor %vm331, %vm333
        %v336 = vsel %vm328, 1, 0
        %v337 = vsel %vm329, 1, 0
        %vm338 = vcmp.eq.s32.totalorder %v336, 1
        %vm339 = vcmp.eq.s32.totalorder %v337, 1
        %v341 = vperm.slane %v323, 0
        %v343 = vsel %vm338, %v341, %v321
        %v344 = vsel %vm339, %v341, %v322
        %v345 = vlog2.pop %v319
        %v346 = vmul.f32 %v345, 0.6931472
        %v347 = vlog2.pop %v320
        %v348 = vmul.f32 %v347, 0.6931472
        %v349 = vmax.f32 %v346, -100.0
        %v350 = vmax.f32 %v348, -100.0
        %v351 = vsub.f32 1.0, %v319
        %v352 = vsub.f32 1.0, %v320
        %v353 = vlog2.pop %v351
        %v354 = vmul.f32 %v353, 0.6931472
        %v355 = vlog2.pop %v352
        %v356 = vmul.f32 %v355, 0.6931472
        %v357 = vmax.f32 %v354, -100.0
        %v358 = vmax.f32 %v356, -100.0
        %v359 = vmul.f32 %v343, %v349
        %v360 = vmul.f32 %v344, %v350
        %v361 = vsub.f32 1.0, %v343
        %v362 = vsub.f32 1.0, %v344
        %v363 = vmul.f32 %v361, %v357
        %v364 = vmul.f32 %v362, %v358
        %v365 = vadd.f32 %v359, %v363
        %v366 = vadd.f32 %v360, %v364
        %v367 = vsub.f32 0.0, %v365
        %v368 = vsub.f32 0.0, %v366
        %v369 = vsub.f32 %v319, %v343
        %v370 = vsub.f32 %v320, %v344
        %v371 = vmul.f32 %v369, %v369
        %v372 = vmul.f32 %v370, %v370
        %v373 = vsel %vm334, 1, 0
        %v374 = vsel %vm335, 1, 0
        %vm375 = vcmp.eq.s32.totalorder %v373, 1
        %vm376 = vcmp.eq.s32.totalorder %v374, 1
        %v377 = vsel %vm375, %v371, %v367
        %v378 = vsel %vm376, %v372, %v368
        %vm379 = vcmp.le.s32.totalorder %v326, 3
        %vm380 = vcmp.le.s32.totalorder %v327, 3
        %v381 = vsel %vm379, 2.0, 1.0
        %v382 = vsel %vm380, 2.0, 1.0
        %v383 = vsel %vm328, 0.5, 0.0
        %v384 = vsel %vm329, 0.5, 0.0
        %v385 = vmul.f32 %v381, %v341
        %v386 = vmul.f32 %v382, %v341
        %v388 = vperm.slane %v324, 0
        %v390 = vmul.f32 %v383, %v388
        %v391 = vmul.f32 %v384, %v388
        %v392 = vadd.f32 %v385, %v390
        %v393 = vadd.f32 %v386, %v391
        %s394 = smul.u32 %s25, 128
        %v395 = vlaneseq
        %v396 = vand.u32 %v395, 127
        %v397 = vstv %s394
        %v398 = vadd.s32 %v397, %v396
        %vm399 = vcmp.lt.s32.totalorder %v398, 384
        %v400 = vmul.f32 %v392, %v377
        %v401 = vmul.f32 %v393, %v378
        %v402 = vsel %vm399, 1, 0
        %vm403 = vcmp.eq.s32.totalorder %v402, 1
        %v404 = vsel %vm403, %v400, 0.0
        %v405 = vsel %vm403, %v401, 0.0
        %v406 = vld [vmem:[#allocation10] sm:$0x1]
        %vm407 = vcmask 1040384
        %v408 = vsel %vm407, %v405, 0.0
        %v409 = vadd.f32 %v404, %v408
        %410 = vadd.xlane.f32.xlu0 %v409
        %v411 = vpop.xlane.xlu0 %410
        %v412 = vrot.slane %v411, 4
        %v413 = vadd.f32 %v411, %v412
        %v414 = vrot.slane %v413, 2
        %v415 = vadd.f32 %v413, %v414
        %v416 = vrot.slane %v415, 1
        %v417 = vadd.f32 %v415, %v416
        %s418 = vtos %v417
        %v419 = vstv %s418
        %v420 = vadd.f32 %v406, %v419
        %vm421 = vcmask 0
        %422 = vst.msk [vmem:[#allocation10] sm:$0x1] %vm421, %v420
        // Predicated region
        $region57: #{tpu_custom_call.1} parent=35 // pred_check
          %p423 = pneg %p142
        $region58: #{tpu_custom_call.1} parent=35 // pred_check_branch
          %425 = sbr.rel (%p423) target = $region60
        $region59: #{tpu_custom_call.1} parent=35 // pred_region
          %427 = vsyncadd [#allocation4], 0
          %s429 = sshll.u32 [#allocation10], 4
          %s430 = int_to_ptr.vmem [resolvable:$true] %s429
          %s431 = sshll.u32 %s4, 4
          %s432 = int_to_ptr.hbm [resolvable:$true] %s431
          %434 = dma.vmem_to_hbm [thread:$0]  %s430, 16, %s432, [#allocation4]
        $region60: #{tpu_custom_call.1} parent=35 // pred_fallthru
          _
        // Predicated region
        $region61: #{tpu_custom_call.1} parent=35 // pred_check
          %p435 = pneg %p142
        $region62: #{tpu_custom_call.1} parent=35 // pred_check_branch
          %437 = sbr.rel (%p435) target = $region64
        $region63: #{tpu_custom_call.1} parent=35 // pred_region
          %439 = dma.done [#allocation4], 16
        $region64: #{tpu_custom_call.1} parent=35 // pred_fallthru
          _
      $region36: #{tpu_custom_call.1} parent=5 // pred_fallthru
        _
      %p440 = scmp.le.s32.totalorder 2, %s20
      // Predicated region
      $region65: #{tpu_custom_call.1} parent=5 // pred_check
        %p441 = pneg %p440
      $region66: #{tpu_custom_call.1} parent=5 // pred_check_branch
        %443 = sbr.rel (%p441) target = $region68
      $region67: #{tpu_custom_call.1} parent=5 // pred_region
        %s444 = ssub.s32 %s20, 2
      $region68: #{tpu_custom_call.1} parent=5 // pred_fallthru
        _
    $region6: #{tpu_custom_call.1} parent=1 // loop_footer
      %s24 = sadd.s32 1, %s20
    $region7: #{tpu_custom_call.1} parent=1 // loop_footer_branch
      %19 = sbr.rel target = $region3
    $region8: #{tpu_custom_call.1} parent=1 // loop_exit
      _
    %445 = vsyncpa [#allocation3], 1
    %s446 = scalar_lea.sflag [#allocation3], 1
    %447 = vsyncpa %s446, 1
    %448 = vsyncpa [#allocation6], 1
    %s449 = scalar_lea.sflag [#allocation6], 1
    %450 = vsyncpa %s449, 1
    %451 = vsyncpa [#allocation9], 1
    %s452 = scalar_lea.sflag [#allocation9], 1
    %453 = vsyncpa %s452, 1
    %454 = vsyncpa [#allocation4], 1
    %s455 = scalar_lea.sflag [#allocation4], 1
    %456 = vsyncpa %s455, 1

</llo_original>
